<compile_context>
chip_gen: v7x
topology: tpu7x:2x2x1
jax: 0.10.0
libtpu: 0.0.40
codegen_flags: <defaults>
</compile_context>

<pallas_src>
import jax
import jax.numpy as jnp
from jax.experimental import pallas as pl
from jax.experimental.pallas import tpu as pltpu


def _sinusoidal_kernel(t_ref, w_ref, m_ref, o_ref):
    # t_ref: (TB, 1) f32      -- timesteps (column vector)
    # w_ref: (1, D_pad) f32   -- per-output-column frequency (w_{j//2}, 0 in pad)
    # m_ref: (1, D_pad) f32   -- parity mask: 1.0 for even columns (sin), 0.0 for odd (cos)
    # o_ref: (TB, D_pad) f32
    x = t_ref[...] * w_ref[...]                      # broadcast outer product (VPU)
    m = m_ref[...]
    o_ref[...] = m * jnp.sin(x) + (1.0 - m) * jnp.cos(x)   # EUP x2 + VPU blend


def sinusoidal_embedding(t: jax.Array,
                         embedding_dims: int = 100,
                         tile_b: int = 1024) -> jax.Array:
    """Pallas TPU implementation of SinusoidalEmbedding.forward."""
    assert embedding_dims % 2 == 0, "embedding_dims must be even (as in torch ref)"
    k_max = embedding_dims // 2
    B = t.shape[0]
    D = embedding_dims

    # Lane-dense padded embedding width (multiple of 128).
    D_pad = max(128, pl.cdiv(D, 128) * 128)

    # Batch tile: multiple of 8 sublanes; capped so VMEM stays tiny
    # (TB=1024, D_pad=128 -> 512 KiB per output buffer; fine on all gens).
    TB = min(tile_b, ((B + 7) // 8) * 8)
    B_pad = pl.cdiv(B, TB) * TB

    t_f32 = t.astype(jnp.float32).reshape(B, 1)
    if B_pad != B:
        t_f32 = jnp.pad(t_f32, ((0, B_pad - B), (0, 0)))

    # Per-output-column frequency and parity mask (computed once, outside kernel).
    #   column j: k = j // 2, w = exp(-ln(10000)*k/k_max), mask = 1 if j even else 0
    # Padded columns (j >= D) get w = 0, mask = 1 -> sin(0) = 0 (sliced off anyway).
    col = jnp.arange(D_pad, dtype=jnp.float32)
    k_per_col = jnp.floor(col / 2.0)
    valid = col < D
    w_full = jnp.where(
        valid,
        jnp.exp(-jnp.log(jnp.float32(10000.0)) * k_per_col / jnp.float32(k_max)),
        jnp.float32(0.0),
    ).reshape(1, D_pad).astype(jnp.float32)
    parity = jnp.where(
        valid,
        1.0 - jnp.mod(col, 2.0),   # 1.0 for even (sin), 0.0 for odd (cos)
        jnp.float32(1.0),          # padded: pick sin(0) = 0
    ).reshape(1, D_pad).astype(jnp.float32)

    grid = (B_pad // TB,)
    out = pl.pallas_call(
        _sinusoidal_kernel,
        out_shape=jax.ShapeDtypeStruct((B_pad, D_pad), jnp.float32),
        grid=grid,
        in_specs=[
            pl.BlockSpec((TB, 1), lambda i: (i, 0)),        # timesteps (tiled)
            pl.BlockSpec((1, D_pad), lambda i: (0, 0)),     # frequencies (resident)
            pl.BlockSpec((1, D_pad), lambda i: (0, 0)),     # parity mask (resident)
        ],
        out_specs=pl.BlockSpec((TB, D_pad), lambda i: (i, 0)),
        compiler_params=pltpu.CompilerParams(
            dimension_semantics=("parallel",)),
    )(t_f32, w_full, parity)

    # Slice back to the requested (B, embedding_dims).
    return out[:B, :D]


def _reference(t: jax.Array, embedding_dims: int = 100) -> jax.Array:
    # Pure-JAX reference mirroring the PyTorch code exactly.
    k_max = embedding_dims // 2
    vals = jnp.arange(0, k_max, dtype=jnp.float32)
    w_ks = jnp.exp(jnp.log(jnp.float32(10000.0)) * (-vals) / k_max)
    tf = t.astype(jnp.float32)
    angles = jnp.outer(tf, w_ks)
    pe = jnp.zeros((t.shape[0], embedding_dims), dtype=jnp.float32)
    pe = pe.at[:, 0::2].set(jnp.sin(angles))
    pe = pe.at[:, 1::2].set(jnp.cos(angles))
    return pe


if __name__ == "__main__":
    key = jax.random.PRNGKey(0)
    B = 8
    embedding_dims = 100  # module default
    # Diffusion timesteps: deterministic floats in [0, 1000)
    t = jax.random.uniform(key, (B,), dtype=jnp.float32, minval=0.0, maxval=1000.0)

    pe = sinusoidal_embedding(t, embedding_dims)
    pe = jax.block_until_ready(pe)

    ref = _reference(t, embedding_dims)
    assert pe.shape == (B, embedding_dims)
    assert pe.dtype == jnp.float32
    # Tolerance accounts for f32 sin/cos argument reduction at |x| ~ 1e3.
    assert jnp.allclose(pe, ref, atol=1e-4, rtol=1e-5), (
        f"max abs err = {jnp.max(jnp.abs(pe - ref))}")

    print("KERNEL_OK")
</pallas_src>

<mosaic_0001>
module attributes {stable_mosaic.version = 11 : i64} {
  func.func @_sinusoidal_kernel(%arg0: i32, %arg1: memref<8x1xf32, #tpu.memory_space<vmem>>, %arg2: memref<1x128xf32, #tpu.memory_space<vmem>>, %arg3: memref<1x128xf32, #tpu.memory_space<vmem>>, %arg4: memref<8x128xf32, #tpu.memory_space<vmem>>) attributes {dimension_semantics = [#tpu.dimension_semantics<parallel>], iteration_bounds = array<i64: 1>, scalar_prefetch = 0 : i64, scratch_operands = 0 : i64, tpu.core_type = #tpu.core_type<tc>, window_params = [{transform_indices = @transform_0, window_bounds = array<i64: 8, 1>}, {pipeline_mode = #tpu.pipeline_mode<synchronous>, transform_indices = @transform_1, window_bounds = array<i64: 1, 128>}, {pipeline_mode = #tpu.pipeline_mode<synchronous>, transform_indices = @transform_2, window_bounds = array<i64: 1, 128>}, {transform_indices = @transform_3, window_bounds = array<i64: 8, 128>}]} {
    %c0 = arith.constant 0 : index
    %c0_0 = arith.constant 0 : index
    %0 = vector.load %arg1[%c0, %c0_0] : memref<8x1xf32, #tpu.memory_space<vmem>>, vector<8x1xf32>
    %c0_1 = arith.constant 0 : index
    %c0_2 = arith.constant 0 : index
    %1 = vector.load %arg2[%c0_1, %c0_2] : memref<1x128xf32, #tpu.memory_space<vmem>>, vector<1x128xf32>
    %2 = vector.broadcast %0 : vector<8x1xf32> to vector<8x128xf32>
    %3 = vector.broadcast %1 : vector<1x128xf32> to vector<8x128xf32>
    %4 = arith.mulf %2, %3 : vector<8x128xf32>
    %c0_3 = arith.constant 0 : index
    %c0_4 = arith.constant 0 : index
    %5 = vector.load %arg3[%c0_3, %c0_4] : memref<1x128xf32, #tpu.memory_space<vmem>>, vector<1x128xf32>
    %6 = math.sin %4 : vector<8x128xf32>
    %7 = vector.broadcast %5 : vector<1x128xf32> to vector<8x128xf32>
    %8 = arith.mulf %7, %6 : vector<8x128xf32>
    %cst = arith.constant 1.000000e+00 : f32
    %9 = vector.broadcast %cst : f32 to vector<1x128xf32>
    %10 = arith.subf %9, %5 : vector<1x128xf32>
    %11 = math.cos %4 : vector<8x128xf32>
    %12 = vector.broadcast %10 : vector<1x128xf32> to vector<8x128xf32>
    %13 = arith.mulf %12, %11 : vector<8x128xf32>
    %14 = arith.addf %8, %13 : vector<8x128xf32>
    %c0_5 = arith.constant 0 : index
    %c0_6 = arith.constant 0 : index
    %15 = vector.load %arg4[%c0_5, %c0_6] : memref<8x128xf32, #tpu.memory_space<vmem>>, vector<8x128xf32>
    tpu.vector_store %arg4[%c0_5, %c0_6], %14 {strides = array<i32>} : memref<8x128xf32, #tpu.memory_space<vmem>>, vector<8x128xf32>,
    return
  }
  func.func @transform_0(%arg0: i32) -> (i32, i32) {
    %c0_i32 = arith.constant 0 : i32
    %c0_i32_0 = arith.constant 0 : i32
    return %arg0, %c0_i32 : i32, i32
  }
  func.func @transform_1(%arg0: i32) -> (i32, i32) {
    %c0_i32 = arith.constant 0 : i32
    %c0_i32_0 = arith.constant 0 : i32
    %c0_i32_1 = arith.constant 0 : i32
    return %c0_i32, %c0_i32_0 : i32, i32
  }
  func.func @transform_2(%arg0: i32) -> (i32, i32) {
    %c0_i32 = arith.constant 0 : i32
    %c0_i32_0 = arith.constant 0 : i32
    %c0_i32_1 = arith.constant 0 : i32
    return %c0_i32, %c0_i32_0 : i32, i32
  }
  func.func @transform_3(%arg0: i32) -> (i32, i32) {
    %c0_i32 = arith.constant 0 : i32
    %c0_i32_0 = arith.constant 0 : i32
    return %arg0, %c0_i32 : i32, i32
  }
}

</mosaic_0001>

<llo_original>
// kernel: tpu_custom_call.1
$region0: #{tpu_custom_call.1}
  #allocation0 [shape = 'u32[]', space=smem, size = 0x4, offset = 0x4, fixed_abs, tag = 'smem constant byte address 0x4 - core index']
  #allocation1 [shape = 'u32[144,128]{1,0:T(1,128)}', space=vmem, size = 0x12000, scoped, tag = 'internal scratch']
  %s0 = inlined_call_operand.vmem [shape: f32[8,1], index: 0, kind: input, shape index: {}]
  %s1 = inlined_call_operand.vmem [shape: f32[1,128], index: 1, kind: input, shape index: {}]
  %s2 = inlined_call_operand.vmem [shape: f32[1,128], index: 2, kind: input, shape index: {}]
  %s3 = inlined_call_operand.hbm [shape: f32[8,128], index: 3, kind: output, shape index: {}]
  %s4 = sld [smem:[#allocation0]]
  $region22: #{tpu_custom_call.1} parent=0
    _
  %s6 = ssub.s32 1, %s4
  %s7 = scalar_select 0, %s6, %s4
  $region1: #{tpu_custom_call.1} parent=0
    #allocation2 [shape = 'u8[4096]{0}', space=vmem, size = 0x1000, scoped, tag = 'output window, operand 0, single buffered']
    #allocation3 [shape = 's32[1]{0}', space=sflag, size = 0x4, scoped, tag = 'scoped memory for tpu_custom_call.1']
    %8 = vsyncpa [#allocation3], 0
    // Predicated region
    $region2: #{tpu_custom_call.1} parent=1 // pred_check
      _
    $region3: #{tpu_custom_call.1} parent=1 // pred_check_branch
      %10 = sbr.rel (0) target = $region5
    $region4: #{tpu_custom_call.1} parent=1 // pred_region
      _
    $region5: #{tpu_custom_call.1} parent=1 // pred_fallthru
      _
    // Predicated region
    $region6: #{tpu_custom_call.1} parent=1 // pred_check
      _
    $region7: #{tpu_custom_call.1} parent=1 // pred_check_branch
      %12 = sbr.rel (0) target = $region9
    $region8: #{tpu_custom_call.1} parent=1 // pred_region
      _
    $region9: #{tpu_custom_call.1} parent=1 // pred_fallthru
      _
    // Predicated region
    $region10: #{tpu_custom_call.1} parent=1 // pred_check
      _
    $region11: #{tpu_custom_call.1} parent=1 // pred_check_branch
      %14 = sbr.rel (0) target = $region13
    $region12: #{tpu_custom_call.1} parent=1 // pred_region
      _
    $region13: #{tpu_custom_call.1} parent=1 // pred_fallthru
      _
    %v15 = vld [vmem:[%s0] sm:$0xff]
    %v16 = vld [vmem:[%s1] sm:$0x1]
    %18 = vset.pattern.permute.xlu0 0
    %19 = vperm.xlu0 %18, %v15
    %v20 = vpop.permute.xlu0 %19
    %v23 = vlaneseq
    %v24 = vshrl.u32 %v23, 7
    %v25 = vsub.s32 0, %v24
    %v26 = vrot.slane %v16, %v25
    %v28 = vmul.f32 %v20, %v26
    %v29 = vld [vmem:[%s2] sm:$0x1]
    %v30 = vand.u32 2147483647, %v28
    %vm31 = vcmp.le.f32.partialorder %v30, 0.7853982
    %vm32 = vcmp.lt.s32.totalorder %v28, 0
    %v33 = vand.u32 %v28, 2139095040
    %v34 = vshrl.u32 %v33, 23
    %v35 = vsub.s32 %v34, 127
    %v36 = vand.u32 2147483647, %v28
    %v37 = vand.u32 %v36, 8388607
    %v38 = vor.u32 %v37, 8388608
    %v39 = vsub.s32 0, %v38
    %v40 = vadd.s32 %v35, 1
    %vm41 = vcmp.gt.s32.totalorder %v40, 0
    %v42 = vsel %vm41, %v40, 0
    %v43 = vshrl.u32 %v42, 5
    %v44 = vand.u32 %v42, 31
    %v45 = vsub.s32 32, %v44
    %v46 = vshrl.u32 683565275, %v45
    %v47 = vshll.u32 683565275, %v44
    %v48 = vshrl.u32 2475754826, %v45
    %v49 = vor.u32 %v47, %v48
    %v50 = vshll.u32 2475754826, %v44
    %v51 = vshrl.u32 2131351028, %v45
    %v52 = vor.u32 %v50, %v51
    %v53 = vshll.u32 2131351028, %v44
    %v54 = vshrl.u32 2102212464, %v45
    %v55 = vor.u32 %v53, %v54
    %v56 = vshll.u32 2102212464, %v44
    %v57 = vshrl.u32 920167782, %v45
    %v58 = vor.u32 %v56, %v57
    %v59 = vshll.u32 920167782, %v44
    %v60 = vshrl.u32 1326507024, %v45
    %v61 = vor.u32 %v59, %v60
    %vm62 = vcmp.lt.s32.totalorder %v43, 1
    %vm63 = vcmp.lt.s32.totalorder %v43, 2
    %vm64 = vcmp.lt.s32.totalorder %v43, 3
    %vm65 = vcmp.lt.s32.totalorder %v43, 4
    %v66 = vsel %vm62, %v46, %v49
    %v67 = vsel %vm65, %v55, 2102212464
    %v68 = vsel %vm64, %v52, %v67
    %v69 = vsel %vm63, %v66, %v68
    %v70 = vsel %vm62, %v49, %v52
    %v71 = vsel %vm65, %v58, 920167782
    %v72 = vsel %vm64, %v55, %v71
    %v73 = vsel %vm63, %v70, %v72
    %v74 = vsel %vm62, %v52, %v55
    %v75 = vsel %vm65, %v61, 1326507024
    %v76 = vsel %vm64, %v58, %v75
    %v77 = vsel %vm63, %v74, %v76
    %v78 = vshll.u32 %v38, 8
    %v79 = vmul.u32.u64.compose %v78, %v77
    %v80 = vextract.low.u32 %v79
    %v81 = vextract.high.u32 %v79
    %v82 = vmul.u32.u64.compose %v78, %v73
    %v83 = vextract.low.u32 %v82
    %v84 = vextract.high.u32 %v82
    %v85 = vmul.u32 %v78, %v69
    %v86 = vadd.s32 %v81, %v83
    %vm87 = vc.u32 %v81, %v83
    %v88 = vadd.s32 %v84, 1
    %v89 = vsel %vm87, %v88, %v84
    %v90 = vadd.s32 %v85, %v89
    %v91 = vadd.s32 %v90, 536870912
    %v92 = vshrl.u32 %v91, 30
    %v93 = vshll.u32 %v92, 30
    %v94 = vsub.s32 %v90, %v93
    %vm95 = vcmp.lt.s32.totalorder %v94, 0
    %v96 = vsub.s32 0, %v94
    %v97 = vsel %vm95, %v96, %v94
    %v98 = vclz %v97
    %v99 = vsub.s32 %v98, 2
    %vm100 = vcmp.gt.s32.totalorder 0, %v99
    %v101 = vsel %vm100, 0, %v99
    %v102 = vsub.s32 32, %v101
    %v103 = vshll.u32 %v94, %v101
    %v104 = vshrl.u32 %v86, %v102
    %v105 = vor.u32 %v103, %v104
    %v106 = vsub.s32 4294967266, %v101
    %v107 = vadd.s32 %v106, 127
    %v108 = vshll.u32 %v107, 23
    %v109 = vor.u32 4788187, %v108
    %v110 = vand.u32 2147483647, %v109
    %v112 = vcvt.s32.f32 %v105
    %v113 = vmul.f32 %v112, %v110
    %v114 = vxor.u32 %v113, 2147483648
    %v115 = vsel %vm32, %v114, %v113
    %v116 = vsub.s32 4, %v92
    %v117 = vsel %vm32, %v116, %v92
    %v118 = vsel %vm31, %v28, %v115
    %v119 = vsel %vm31, 0, %v117
    %v120 = vcosq.f32.pop %v118
    %v121 = vsinq.f32.pop %v118
    %vm122 = vweird.f32 %v28
    %v123 = vadd.s32 %v119, 3
    %v124 = vand.u32 %v123, 3
    %vm125 = vcmp.lt.s32.totalorder %v124, 2
    %vm126 = vcmp.eq.s32.totalorder %v124, 0
    %v127 = vxor.u32 %v121, 2147483648
    %v128 = vsel %vm126, %v120, %v127
    %vm129 = vcmp.eq.s32.totalorder %v124, 2
    %v130 = vxor.u32 %v120, 2147483648
    %v131 = vsel %vm129, %v130, %v121
    %v132 = vsel %vm125, %v128, %v131
    %v133 = vsel %vm122, nan, %v132
    %v135 = vlaneseq
    %v136 = vshrl.u32 %v135, 7
    %v137 = vsub.s32 0, %v136
    %v138 = vrot.slane %v29, %v137
    %v140 = vmul.f32 %v138, %v133
    %v141 = vsub.f32 1.0, %v29
    %v142 = vand.u32 2147483647, %v28
    %vm143 = vcmp.le.f32.partialorder %v142, 0.7853982
    %vm144 = vcmp.lt.s32.totalorder %v28, 0
    %v145 = vand.u32 %v28, 2139095040
    %v146 = vshrl.u32 %v145, 23
    %v147 = vsub.s32 %v146, 127
    %v148 = vand.u32 2147483647, %v28
    %v149 = vand.u32 %v148, 8388607
    %v150 = vor.u32 %v149, 8388608
    %v151 = vsub.s32 0, %v150
    %v152 = vadd.s32 %v147, 1
    %vm153 = vcmp.gt.s32.totalorder %v152, 0
    %v154 = vsel %vm153, %v152, 0
    %v155 = vshrl.u32 %v154, 5
    %v156 = vand.u32 %v154, 31
    %v157 = vsub.s32 32, %v156
    %v158 = vshrl.u32 683565275, %v157
    %v159 = vshll.u32 683565275, %v156
    %v160 = vshrl.u32 2475754826, %v157
    %v161 = vor.u32 %v159, %v160
    %v162 = vshll.u32 2475754826, %v156
    %v163 = vshrl.u32 2131351028, %v157
    %v164 = vor.u32 %v162, %v163
    %v165 = vshll.u32 2131351028, %v156
    %v166 = vshrl.u32 2102212464, %v157
    %v167 = vor.u32 %v165, %v166
    %v168 = vshll.u32 2102212464, %v156
    %v169 = vshrl.u32 920167782, %v157
    %v170 = vor.u32 %v168, %v169
    %v171 = vshll.u32 920167782, %v156
    %v172 = vshrl.u32 1326507024, %v157
    %v173 = vor.u32 %v171, %v172
    %vm174 = vcmp.lt.s32.totalorder %v155, 1
    %vm175 = vcmp.lt.s32.totalorder %v155, 2
    %vm176 = vcmp.lt.s32.totalorder %v155, 3
    %vm177 = vcmp.lt.s32.totalorder %v155, 4
    %v178 = vsel %vm174, %v158, %v161
    %v179 = vsel %vm177, %v167, 2102212464
    %v180 = vsel %vm176, %v164, %v179
    %v181 = vsel %vm175, %v178, %v180
    %v182 = vsel %vm174, %v161, %v164
    %v183 = vsel %vm177, %v170, 920167782
    %v184 = vsel %vm176, %v167, %v183
    %v185 = vsel %vm175, %v182, %v184
    %v186 = vsel %vm174, %v164, %v167
    %v187 = vsel %vm177, %v173, 1326507024
    %v188 = vsel %vm176, %v170, %v187
    %v189 = vsel %vm175, %v186, %v188
    %v190 = vshll.u32 %v150, 8
    %v191 = vmul.u32.u64.compose %v190, %v189
    %v192 = vextract.low.u32 %v191
    %v193 = vextract.high.u32 %v191
    %v194 = vmul.u32.u64.compose %v190, %v185
    %v195 = vextract.low.u32 %v194
    %v196 = vextract.high.u32 %v194
    %v197 = vmul.u32 %v190, %v181
    %v198 = vadd.s32 %v193, %v195
    %vm199 = vc.u32 %v193, %v195
    %v200 = vadd.s32 %v196, 1
    %v201 = vsel %vm199, %v200, %v196
    %v202 = vadd.s32 %v197, %v201
    %v203 = vadd.s32 %v202, 536870912
    %v204 = vshrl.u32 %v203, 30
    %v205 = vshll.u32 %v204, 30
    %v206 = vsub.s32 %v202, %v205
    %vm207 = vcmp.lt.s32.totalorder %v206, 0
    %v208 = vsub.s32 0, %v206
    %v209 = vsel %vm207, %v208, %v206
    %v210 = vclz %v209
    %v211 = vsub.s32 %v210, 2
    %vm212 = vcmp.gt.s32.totalorder 0, %v211
    %v213 = vsel %vm212, 0, %v211
    %v214 = vsub.s32 32, %v213
    %v215 = vshll.u32 %v206, %v213
    %v216 = vshrl.u32 %v198, %v214
    %v217 = vor.u32 %v215, %v216
    %v218 = vsub.s32 4294967266, %v213
    %v219 = vadd.s32 %v218, 127
    %v220 = vshll.u32 %v219, 23
    %v221 = vor.u32 4788187, %v220
    %v222 = vand.u32 2147483647, %v221
    %v224 = vcvt.s32.f32 %v217
    %v225 = vmul.f32 %v224, %v222
    %v226 = vxor.u32 %v225, 2147483648
    %v227 = vsel %vm144, %v226, %v225
    %v228 = vsub.s32 4, %v204
    %v229 = vsel %vm144, %v228, %v204
    %v230 = vsel %vm143, %v28, %v227
    %v231 = vsel %vm143, 0, %v229
    %v232 = vcosq.f32.pop %v230
    %v233 = vsinq.f32.pop %v230
    %vm234 = vweird.f32 %v28
    %v235 = vand.u32 %v231, 3
    %vm236 = vcmp.lt.s32.totalorder %v235, 2
    %vm237 = vcmp.eq.s32.totalorder %v235, 0
    %v238 = vxor.u32 %v233, 2147483648
    %v239 = vsel %vm237, %v232, %v238
    %vm240 = vcmp.eq.s32.totalorder %v235, 2
    %v241 = vxor.u32 %v232, 2147483648
    %v242 = vsel %vm240, %v241, %v233
    %v243 = vsel %vm236, %v239, %v242
    %v244 = vsel %vm234, nan, %v243
    %v246 = vlaneseq
    %v247 = vshrl.u32 %v246, 7
    %v248 = vsub.s32 0, %v247
    %v249 = vrot.slane %v141, %v248
    %v251 = vmul.f32 %v249, %v244
    %v252 = vadd.f32 %v140, %v251
    %253 = vst [vmem:[#allocation2] sm:$0xff] %v252
    // Predicated region
    $region14: #{tpu_custom_call.1} parent=1 // pred_check
      _
    $region15: #{tpu_custom_call.1} parent=1 // pred_check_branch
      %255 = sbr.rel (0) target = $region17
    $region16: #{tpu_custom_call.1} parent=1 // pred_region
      %s257 = ssub.s32 128, 128
      %258 = vsyncadd [#allocation3], %s257
      %s260 = sshll.u32 [#allocation2], 4
      %s261 = int_to_ptr.vmem [resolvable:$true] %s260
      %263 = dma.vmem_to_hbm [thread:$0]  %s261, 128, %s3, [#allocation3]
    $region17: #{tpu_custom_call.1} parent=1 // pred_fallthru
      _
    // Predicated region
    $region18: #{tpu_custom_call.1} parent=1 // pred_check
      _
    $region19: #{tpu_custom_call.1} parent=1 // pred_check_branch
      %265 = sbr.rel (0) target = $region21
    $region20: #{tpu_custom_call.1} parent=1 // pred_region
      %266 = dma.done [#allocation3], 128
    $region21: #{tpu_custom_call.1} parent=1 // pred_fallthru
      _
    %267 = vsyncpa [#allocation3], 1

</llo_original>
